<compile_context>
chip_gen: v7x
topology: tpu7x:2x2x1
jax: 0.10.0
libtpu: 0.0.40
codegen_flags: <defaults>
</compile_context>

<pallas_src>
import functools

import jax
import jax.numpy as jnp
from jax.experimental import pallas as pl
from jax.experimental.pallas import tpu as pltpu


# ----------------------------------------------------------------------------- kernels
def _stats_kernel(x_ref, g_ref, b_ref, scale_ref, shift_ref, sum_acc, sq_acc,
                  *, eps, inv_count, reduce_axes):
    """Pass 1: accumulate per-channel sum / sumsq across batch tiles, finalize scale/shift."""
    step = pl.program_id(0)

    @pl.when(step == 0)
    def _init():
        sum_acc[...] = jnp.zeros_like(sum_acc)
        sq_acc[...] = jnp.zeros_like(sq_acc)

    x = x_ref[...].astype(jnp.float32)                      # (tile_n, C[, L])
    sum_acc[...] += jnp.sum(x, axis=reduce_axes, keepdims=True)
    sq_acc[...] += jnp.sum(x * x, axis=reduce_axes, keepdims=True)

    @pl.when(step == pl.num_programs(0) - 1)
    def _finalize():
        mean = sum_acc[...] * inv_count
        var = sq_acc[...] * inv_count - mean * mean          # biased variance (BN norm)
        var = jnp.maximum(var, 0.0)                          # guard f32 cancellation
        inv_std = jax.lax.rsqrt(var + eps)                   # EUP transcendental
        scale = g_ref[...] * inv_std
        scale_ref[...] = scale
        shift_ref[...] = b_ref[...] - mean * scale


def _norm_kernel(x_ref, scale_ref, shift_ref, o_ref):
    """Pass 2: y = x * scale + shift, per channel (pure VPU, parallel over batch tiles)."""
    x = x_ref[...].astype(jnp.float32)
    o_ref[...] = (x * scale_ref[...] + shift_ref[...]).astype(o_ref.dtype)


# ----------------------------------------------------------------------------- tiling
def _pick_tile_3d(N, C, L, itemsize, target_bytes=2 << 20):
    """Batch tile for (N, C, L): leading dim, no (8,128) constraint."""
    t = max(1, min(N, target_bytes // max(C * L * itemsize, 1)))
    if N >= 2:
        t = min(t, max(1, N // 2))          # >= 2 grid steps -> both v7x TensorCores
    while N % t:
        t -= 1
    return t


def _pick_tile_2d(N, C, itemsize, target_bytes=2 << 20):
    """Batch tile for (N, C): tile_n is the sublane dim -> multiple of 8 or full N."""
    if N % 8:
        return N
    t = (target_bytes // max(C * itemsize, 1)) // 8 * 8
    t = max(8, min(t, N))
    if N >= 16:
        t = min(t, max(8, (N // 2) // 8 * 8))
    while N % t:
        t -= 8
    return t


# ----------------------------------------------------------------------------- wrapper
def batchnorm1d_forward(x, gamma, beta, *, eps=1e-5):
    """nn.BatchNorm1d training-mode forward.

    x: (N, C) or (N, C, L), native layout (no wrapper transpose/pad).
    gamma, beta: (C,).  Normalizes each channel with batch stats over (N[, L]).
    """
    if x.ndim not in (2, 3):
        raise ValueError("BatchNorm1d expects (N, C) or (N, C, L) input")

    itemsize = jnp.dtype(x.dtype).itemsize

    if x.ndim == 3:
        N, C, L = x.shape
        count = N * L
        tile_n = _pick_tile_3d(N, C, L, itemsize)
        x_block = (tile_n, C, L)
        x_idx = lambda i: (i, 0, 0)
        stat_shape = (1, C, 1)
        stat_idx = lambda i: (0, 0, 0)
        reduce_axes = (0, 2)
        n_elem = N * C * L
    else:
        N, C = x.shape
        count = N
        tile_n = _pick_tile_2d(N, C, itemsize)
        x_block = (tile_n, C)
        x_idx = lambda i: (i, 0)
        stat_shape = (1, C)
        stat_idx = lambda i: (0, 0)
        reduce_axes = (0,)
        n_elem = N * C

    grid = (N // tile_n,)

    # Only wrapper-side ops: tiny (C,) -> stat_shape reshapes of the affine params.
    g = gamma.astype(jnp.float32).reshape(stat_shape)
    b = beta.astype(jnp.float32).reshape(stat_shape)

    x_spec = pl.BlockSpec(x_block, x_idx)
    stat_spec = pl.BlockSpec(stat_shape, stat_idx)

    def _cparams(sem):
        return pltpu.CompilerParams(
            dimension_semantics=(sem,),
            vmem_limit_bytes=32 * 1024 * 1024,   # explicit; blocks sized well below this
        )

    # ---- pass 1: per-channel scale/shift from batch statistics (reduction axis) ----
    stats_kernel = functools.partial(
        _stats_kernel, eps=float(eps), inv_count=1.0 / float(count),
        reduce_axes=reduce_axes)
    scale, shift = pl.pallas_call(
        stats_kernel,
        out_shape=(jax.ShapeDtypeStruct(stat_shape, jnp.float32),
                   jax.ShapeDtypeStruct(stat_shape, jnp.float32)),
        grid_spec=pltpu.PrefetchScalarGridSpec(
            num_scalar_prefetch=0,
            grid=grid,
            in_specs=[x_spec, stat_spec, stat_spec],
            out_specs=[stat_spec, stat_spec],
            scratch_shapes=[pltpu.VMEM(stat_shape, jnp.float32),
                            pltpu.VMEM(stat_shape, jnp.float32)]),
        compiler_params=_cparams("arbitrary"),
        cost_estimate=pl.CostEstimate(
            flops=int(3 * n_elem),
            transcendentals=int(C),
            bytes_accessed=int(n_elem * itemsize + 4 * C * 4)),
    )(x, g, b)

    # ---- pass 2: normalize, embarrassingly parallel over batch tiles ---------------
    out = pl.pallas_call(
        _norm_kernel,
        out_shape=jax.ShapeDtypeStruct(x.shape, x.dtype),
        grid_spec=pltpu.PrefetchScalarGridSpec(
            num_scalar_prefetch=0,
            grid=grid,
            in_specs=[x_spec, stat_spec, stat_spec],
            out_specs=x_spec),
        compiler_params=_cparams("parallel"),
        cost_estimate=pl.CostEstimate(
            flops=int(2 * n_elem),
            transcendentals=0,
            bytes_accessed=int(2 * n_elem * itemsize + 2 * C * 4)),
    )(x, scale, shift)

    return out


# ----------------------------------------------------------------------------- demo / check
if __name__ == "__main__":
    # Small shapes consistent with the module: BatchNorm1d over features=32 applied
    # to a (batch=2, features=32, seq=8) tensor.
    N, C, L = 2, 32, 8
    eps = 1e-5   # BatchNorm1d default (the module never forwards its eps=1e-6 arg)

    key = jax.random.PRNGKey(0)
    x = jax.random.normal(key, (N, C, L), jnp.float32)
    gamma = jnp.ones((C,), jnp.float32)   # nn.BatchNorm1d default weight
    beta = jnp.zeros((C,), jnp.float32)   # nn.BatchNorm1d default bias

    out = batchnorm1d_forward(x, gamma, beta, eps=eps)
    out = jax.block_until_ready(out)

    # Pure-JAX reference: training-mode BatchNorm1d (batch stats over N and L,
    # biased variance for normalization).
    mean = x.mean(axis=(0, 2), keepdims=True)
    var = x.var(axis=(0, 2), keepdims=True)
    ref = (x - mean) / jnp.sqrt(var + eps) * gamma.reshape(1, C, 1) + beta.reshape(1, C, 1)

    assert out.shape == x.shape
    assert jnp.allclose(out, ref, atol=1e-4, rtol=1e-4), "mismatch vs reference"
    print("KERNEL_OK")
</pallas_src>

<mosaic_0001>
module attributes {stable_mosaic.version = 11 : i64} {
  func.func @_stats_kernel(%arg0: i32, %arg1: memref<1x32x8xf32, #tpu.memory_space<vmem>>, %arg2: memref<1x32x1xf32, #tpu.memory_space<vmem>>, %arg3: memref<1x32x1xf32, #tpu.memory_space<vmem>>, %arg4: memref<1x32x1xf32, #tpu.memory_space<vmem>>, %arg5: memref<1x32x1xf32, #tpu.memory_space<vmem>>, %arg6: memref<1x32x1xf32, #tpu.memory_space<vmem>>, %arg7: memref<1x32x1xf32, #tpu.memory_space<vmem>>) attributes {dimension_semantics = [#tpu.dimension_semantics<arbitrary>], iteration_bounds = array<i64: 2>, scalar_prefetch = 0 : i64, scratch_operands = 2 : i64, tpu.core_type = #tpu.core_type<tc>, window_params = [{transform_indices = @transform_0, window_bounds = array<i64: 1, 32, 8>}, {pipeline_mode = #tpu.pipeline_mode<synchronous>, transform_indices = @transform_1, window_bounds = array<i64: 1, 32, 1>}, {pipeline_mode = #tpu.pipeline_mode<synchronous>, transform_indices = @transform_2, window_bounds = array<i64: 1, 32, 1>}, {pipeline_mode = #tpu.pipeline_mode<synchronous>, transform_indices = @transform_3, window_bounds = array<i64: 1, 32, 1>}, {pipeline_mode = #tpu.pipeline_mode<synchronous>, transform_indices = @transform_4, window_bounds = array<i64: 1, 32, 1>}]} {
    %c0_i32 = arith.constant 0 : i32
    %0 = arith.cmpi eq, %arg0, %c0_i32 : i32
    %1 = arith.extui %0 : i1 to i32
    %c0_i32_0 = arith.constant 0 : i32
    %2 = arith.cmpi ne, %1, %c0_i32_0 : i32
    scf.if %2 {
      %cst_17 = arith.constant 0.000000e+00 : f32
      %18 = vector.broadcast %cst_17 : f32 to vector<1x32x1xf32>
      %c0_18 = arith.constant 0 : index
      %c0_19 = arith.constant 0 : index
      %c0_20 = arith.constant 0 : index
      %19 = vector.load %arg6[%c0_18, %c0_19, %c0_20] : memref<1x32x1xf32, #tpu.memory_space<vmem>>, vector<1x32x1xf32>
      tpu.vector_store %arg6[%c0_18, %c0_19, %c0_20], %18 {strides = array<i32>} : memref<1x32x1xf32, #tpu.memory_space<vmem>>, vector<1x32x1xf32>,
      %cst_21 = arith.constant 0.000000e+00 : f32
      %20 = vector.broadcast %cst_21 : f32 to vector<1x32x1xf32>
      %c0_22 = arith.constant 0 : index
      %c0_23 = arith.constant 0 : index
      %c0_24 = arith.constant 0 : index
      %21 = vector.load %arg7[%c0_22, %c0_23, %c0_24] : memref<1x32x1xf32, #tpu.memory_space<vmem>>, vector<1x32x1xf32>
      tpu.vector_store %arg7[%c0_22, %c0_23, %c0_24], %20 {strides = array<i32>} : memref<1x32x1xf32, #tpu.memory_space<vmem>>, vector<1x32x1xf32>,
    } else {
    }
    %c0 = arith.constant 0 : index
    %c0_1 = arith.constant 0 : index
    %c0_2 = arith.constant 0 : index
    %3 = vector.load %arg1[%c0, %c0_1, %c0_2] : memref<1x32x8xf32, #tpu.memory_space<vmem>>, vector<1x32x8xf32>
    %c0_3 = arith.constant 0 : index
    %c0_4 = arith.constant 0 : index
    %c0_5 = arith.constant 0 : index
    %4 = vector.load %arg6[%c0_3, %c0_4, %c0_5] : memref<1x32x1xf32, #tpu.memory_space<vmem>>, vector<1x32x1xf32>
    %cst = arith.constant dense<0.000000e+00> : vector<32xf32>
    %5 = vector.multi_reduction <add>, %3, %cst [0, 2] : vector<1x32x8xf32> to vector<32xf32>
    %6 = vector.shape_cast %5 : vector<32xf32> to vector<1x32x1xf32>
    %7 = arith.addf %4, %6 : vector<1x32x1xf32>
    %c0_6 = arith.constant 0 : index
    %c0_7 = arith.constant 0 : index
    %c0_8 = arith.constant 0 : index
    %8 = vector.load %arg6[%c0_6, %c0_7, %c0_8] : memref<1x32x1xf32, #tpu.memory_space<vmem>>, vector<1x32x1xf32>
    tpu.vector_store %arg6[%c0_6, %c0_7, %c0_8], %7 {strides = array<i32>} : memref<1x32x1xf32, #tpu.memory_space<vmem>>, vector<1x32x1xf32>,
    %c0_9 = arith.constant 0 : index
    %c0_10 = arith.constant 0 : index
    %c0_11 = arith.constant 0 : index
    %9 = vector.load %arg7[%c0_9, %c0_10, %c0_11] : memref<1x32x1xf32, #tpu.memory_space<vmem>>, vector<1x32x1xf32>
    %10 = arith.mulf %3, %3 : vector<1x32x8xf32>
    %cst_12 = arith.constant dense<0.000000e+00> : vector<32xf32>
    %11 = vector.multi_reduction <add>, %10, %cst_12 [0, 2] : vector<1x32x8xf32> to vector<32xf32>
    %12 = vector.shape_cast %11 : vector<32xf32> to vector<1x32x1xf32>
    %13 = arith.addf %9, %12 : vector<1x32x1xf32>
    %c0_13 = arith.constant 0 : index
    %c0_14 = arith.constant 0 : index
    %c0_15 = arith.constant 0 : index
    %14 = vector.load %arg7[%c0_13, %c0_14, %c0_15] : memref<1x32x1xf32, #tpu.memory_space<vmem>>, vector<1x32x1xf32>
    tpu.vector_store %arg7[%c0_13, %c0_14, %c0_15], %13 {strides = array<i32>} : memref<1x32x1xf32, #tpu.memory_space<vmem>>, vector<1x32x1xf32>,
    %c1_i32 = arith.constant 1 : i32
    %15 = arith.cmpi eq, %arg0, %c1_i32 : i32
    %16 = arith.extui %15 : i1 to i32
    %c0_i32_16 = arith.constant 0 : i32
    %17 = arith.cmpi ne, %16, %c0_i32_16 : i32
    scf.if %17 {
      %c0_17 = arith.constant 0 : index
      %c0_18 = arith.constant 0 : index
      %c0_19 = arith.constant 0 : index
      %18 = vector.load %arg6[%c0_17, %c0_18, %c0_19] : memref<1x32x1xf32, #tpu.memory_space<vmem>>, vector<1x32x1xf32>
      %cst_20 = arith.constant 6.250000e-02 : f32
      %19 = vector.broadcast %cst_20 : f32 to vector<1x32x1xf32>
      %20 = arith.mulf %18, %19 : vector<1x32x1xf32>
      %c0_21 = arith.constant 0 : index
      %c0_22 = arith.constant 0 : index
      %c0_23 = arith.constant 0 : index
      %21 = vector.load %arg7[%c0_21, %c0_22, %c0_23] : memref<1x32x1xf32, #tpu.memory_space<vmem>>, vector<1x32x1xf32>
      %cst_24 = arith.constant 6.250000e-02 : f32
      %22 = vector.broadcast %cst_24 : f32 to vector<1x32x1xf32>
      %23 = arith.mulf %21, %22 : vector<1x32x1xf32>
      %24 = arith.mulf %20, %20 : vector<1x32x1xf32>
      %25 = arith.subf %23, %24 : vector<1x32x1xf32>
      %cst_25 = arith.constant 0.000000e+00 : f32
      %26 = vector.broadcast %cst_25 : f32 to vector<1x32x1xf32>
      %27 = arith.maximumf %25, %26 : vector<1x32x1xf32>
      %cst_26 = arith.constant 9.99999974E-6 : f32
      %28 = vector.broadcast %cst_26 : f32 to vector<1x32x1xf32>
      %29 = arith.addf %27, %28 : vector<1x32x1xf32>
      %30 = math.rsqrt %29 : vector<1x32x1xf32>
      %c0_27 = arith.constant 0 : index
      %c0_28 = arith.constant 0 : index
      %c0_29 = arith.constant 0 : index
      %31 = vector.load %arg2[%c0_27, %c0_28, %c0_29] : memref<1x32x1xf32, #tpu.memory_space<vmem>>, vector<1x32x1xf32>
      %32 = arith.mulf %31, %30 : vector<1x32x1xf32>
      %c0_30 = arith.constant 0 : index
      %c0_31 = arith.constant 0 : index
      %c0_32 = arith.constant 0 : index
      %33 = vector.load %arg4[%c0_30, %c0_31, %c0_32] : memref<1x32x1xf32, #tpu.memory_space<vmem>>, vector<1x32x1xf32>
      tpu.vector_store %arg4[%c0_30, %c0_31, %c0_32], %32 {strides = array<i32>} : memref<1x32x1xf32, #tpu.memory_space<vmem>>, vector<1x32x1xf32>,
      %c0_33 = arith.constant 0 : index
      %c0_34 = arith.constant 0 : index
      %c0_35 = arith.constant 0 : index
      %34 = vector.load %arg3[%c0_33, %c0_34, %c0_35] : memref<1x32x1xf32, #tpu.memory_space<vmem>>, vector<1x32x1xf32>
      %35 = arith.mulf %20, %32 : vector<1x32x1xf32>
      %36 = arith.subf %34, %35 : vector<1x32x1xf32>
      %c0_36 = arith.constant 0 : index
      %c0_37 = arith.constant 0 : index
      %c0_38 = arith.constant 0 : index
      %37 = vector.load %arg5[%c0_36, %c0_37, %c0_38] : memref<1x32x1xf32, #tpu.memory_space<vmem>>, vector<1x32x1xf32>
      tpu.vector_store %arg5[%c0_36, %c0_37, %c0_38], %36 {strides = array<i32>} : memref<1x32x1xf32, #tpu.memory_space<vmem>>, vector<1x32x1xf32>,
    } else {
    }
    return
  }
  func.func @transform_0(%arg0: i32) -> (i32, i32, i32) {
    %c0_i32 = arith.constant 0 : i32
    %c0_i32_0 = arith.constant 0 : i32
    %c0_i32_1 = arith.constant 0 : i32
    return %arg0, %c0_i32, %c0_i32_0 : i32, i32, i32
  }
  func.func @transform_1(%arg0: i32) -> (i32, i32, i32) {
    %c0_i32 = arith.constant 0 : i32
    %c0_i32_0 = arith.constant 0 : i32
    %c0_i32_1 = arith.constant 0 : i32
    %c0_i32_2 = arith.constant 0 : i32
    return %c0_i32, %c0_i32_0, %c0_i32_1 : i32, i32, i32
  }
  func.func @transform_2(%arg0: i32) -> (i32, i32, i32) {
    %c0_i32 = arith.constant 0 : i32
    %c0_i32_0 = arith.constant 0 : i32
    %c0_i32_1 = arith.constant 0 : i32
    %c0_i32_2 = arith.constant 0 : i32
    return %c0_i32, %c0_i32_0, %c0_i32_1 : i32, i32, i32
  }
  func.func @transform_3(%arg0: i32) -> (i32, i32, i32) {
    %c0_i32 = arith.constant 0 : i32
    %c0_i32_0 = arith.constant 0 : i32
    %c0_i32_1 = arith.constant 0 : i32
    %c0_i32_2 = arith.constant 0 : i32
    return %c0_i32, %c0_i32_0, %c0_i32_1 : i32, i32, i32
  }
  func.func @transform_4(%arg0: i32) -> (i32, i32, i32) {
    %c0_i32 = arith.constant 0 : i32
    %c0_i32_0 = arith.constant 0 : i32
    %c0_i32_1 = arith.constant 0 : i32
    %c0_i32_2 = arith.constant 0 : i32
    return %c0_i32, %c0_i32_0, %c0_i32_1 : i32, i32, i32
  }
}

</mosaic_0001>

<llo_original>
// kernel: tpu_custom_call.1
$region0: #{tpu_custom_call.1}
  #allocation0 [shape = 'u32[]', space=smem, size = 0x4, offset = 0x4, fixed_abs, tag = 'smem constant byte address 0x4 - core index']
  #allocation1 [shape = 'u32[144,128]{1,0:T(1,128)}', space=vmem, size = 0x12000, scoped, tag = 'internal scratch']
  #allocation2 [shape = 'f32[1,32,1]{2,1,0:T(8,128)}', space=vmem, size = 0x4000, scoped, tag = 'scratch operand']
  #allocation3 [shape = 'f32[1,32,1]{2,1,0:T(8,128)}', space=vmem, size = 0x4000, scoped, tag = 'scratch operand']
  %s0 = inlined_call_operand.vmem [shape: f32[2,32,8], index: 0, kind: input, shape index: {}]
  %s1 = inlined_call_operand.vmem [shape: f32[1,32,1], index: 1, kind: input, shape index: {}]
  %s2 = inlined_call_operand.vmem [shape: f32[1,32,1], index: 2, kind: input, shape index: {}]
  %s3 = inlined_call_operand.vmem [shape: f32[1,32,1], index: 3, kind: output, shape index: {0}]
  %s4 = inlined_call_operand.vmem [shape: f32[1,32,1], index: 4, kind: output, shape index: {1}]
  %5 = xla_tuple %s3, %s4
  %s6 = sld [smem:[#allocation0]]
  $region61: #{tpu_custom_call.1} parent=0
    _
  %s8 = ssub.s32 1, %s6
  %s9 = scalar_select 0, %s8, %s6
  loop: start=0, step=1, limit=4
  $region2: #{tpu_custom_call.1} parent=0 // loop_pre_header
    _
  $region3: #{tpu_custom_call.1} parent=0 // loop_header
    %s11 = sphi 0, %s15
    %p12 = scmp.ge.s32.totalorder %s11, 4
    %s21 = sphi 0, %s23
    %s24 = sphi 0, %s21
    %s25 = sphi 0, %s24
    %s41 = sphi 0, %s25
    %s45 = sphi 0, %s45
    %s47 = sphi 0, %s45
    %s48 = sphi 0, %s47
    %s62 = sphi 0, %s48
    %s66 = sphi 0, %s66
    %s68 = sphi 0, %s66
    %s69 = sphi 0, %s68
    %s83 = sphi 0, %s69
    %s87 = sphi 0, %s87
    %s89 = sphi 0, %s87
    %s90 = sphi 0, %s89
    %s104 = sphi 0, %s90
    %s108 = sphi 0, %s108
    %s110 = sphi 0, %s108
    %s111 = sphi 0, %s110
    %s125 = sphi 0, %s111
  $region4: #{tpu_custom_call.1} parent=0 // loop_header_branch
    %14 = sbr.rel (%p12) target = $region8
  $region5: #{tpu_custom_call.1} parent=0 // loop_body
    %s16 = ssub.s32 %s11, 1
    %s17 = ssub.s32 %s11, 2
    %s18 = sadd.s32 %s11, 1
    %s19 = ssub.s32 %s11, %s18
    %p20 = scmp.eq.s32.totalorder %s19, 0
    %s22 = sadd.s32 %s21, 1
    %s23 = scalar_select %p20, %s21, %s22
    %p26 = pneg %p20
    %p27 = scmp.eq.s32.totalorder %s11, 1
    %p28 = por %p26, %p27
    %p29 = scmp.ne.s32.totalorder %s21, %s24
    %p30 = scmp.eq.s32.totalorder %s11, 0
    %p31 = por %p29, %p30
    %p32 = scmp.ne.s32.totalorder %s21, %s24
    %p33 = scmp.eq.s32.totalorder %s16, 1
    %p34 = por %p32, %p33
    %p35 = scmp.ne.s32.totalorder %s24, %s25
    %p36 = scmp.eq.s32.totalorder %s16, 0
    %p37 = por %p35, %p36
    %p38 = scmp.ne.s32.totalorder %s24, %s25
    %p39 = scmp.eq.s32.totalorder %s17, 1
    %p40 = por %p38, %p39
    %p42 = scmp.ne.s32.totalorder %s25, %s41
    %p43 = scmp.eq.s32.totalorder %s17, 0
    %p44 = por %p42, %p43
    %s46 = sadd.s32 %s45, 1
    %p49 = scmp.eq.s32.totalorder %s11, 1
    %p50 = scmp.ne.s32.totalorder %s45, %s47
    %p51 = scmp.eq.s32.totalorder %s11, 0
    %p52 = por %p50, %p51
    %p53 = scmp.ne.s32.totalorder %s45, %s47
    %p54 = scmp.eq.s32.totalorder %s16, 1
    %p55 = por %p53, %p54
    %p56 = scmp.ne.s32.totalorder %s47, %s48
    %p57 = scmp.eq.s32.totalorder %s16, 0
    %p58 = por %p56, %p57
    %p59 = scmp.ne.s32.totalorder %s47, %s48
    %p60 = scmp.eq.s32.totalorder %s17, 1
    %p61 = por %p59, %p60
    %p63 = scmp.ne.s32.totalorder %s48, %s62
    %p64 = scmp.eq.s32.totalorder %s17, 0
    %p65 = por %p63, %p64
    %s67 = sadd.s32 %s66, 1
    %p70 = scmp.eq.s32.totalorder %s11, 1
    %p71 = scmp.ne.s32.totalorder %s66, %s68
    %p72 = scmp.eq.s32.totalorder %s11, 0
    %p73 = por %p71, %p72
    %p74 = scmp.ne.s32.totalorder %s66, %s68
    %p75 = scmp.eq.s32.totalorder %s16, 1
    %p76 = por %p74, %p75
    %p77 = scmp.ne.s32.totalorder %s68, %s69
    %p78 = scmp.eq.s32.totalorder %s16, 0
    %p79 = por %p77, %p78
    %p80 = scmp.ne.s32.totalorder %s68, %s69
    %p81 = scmp.eq.s32.totalorder %s17, 1
    %p82 = por %p80, %p81
    %p84 = scmp.ne.s32.totalorder %s69, %s83
    %p85 = scmp.eq.s32.totalorder %s17, 0
    %p86 = por %p84, %p85
    %s88 = sadd.s32 %s87, 1
    %p91 = scmp.eq.s32.totalorder %s11, 1
    %p92 = scmp.ne.s32.totalorder %s87, %s89
    %p93 = scmp.eq.s32.totalorder %s11, 0
    %p94 = por %p92, %p93
    %p95 = scmp.ne.s32.totalorder %s87, %s89
    %p96 = scmp.eq.s32.totalorder %s16, 1
    %p97 = por %p95, %p96
    %p98 = scmp.ne.s32.totalorder %s89, %s90
    %p99 = scmp.eq.s32.totalorder %s16, 0
    %p100 = por %p98, %p99
    %p101 = scmp.ne.s32.totalorder %s89, %s90
    %p102 = scmp.eq.s32.totalorder %s17, 1
    %p103 = por %p101, %p102
    %p105 = scmp.ne.s32.totalorder %s90, %s104
    %p106 = scmp.eq.s32.totalorder %s17, 0
    %p107 = por %p105, %p106
    %s109 = sadd.s32 %s108, 1
    %p112 = scmp.eq.s32.totalorder %s11, 1
    %p113 = scmp.ne.s32.totalorder %s108, %s110
    %p114 = scmp.eq.s32.totalorder %s11, 0
    %p115 = por %p113, %p114
    %p116 = scmp.ne.s32.totalorder %s108, %s110
    %p117 = scmp.eq.s32.totalorder %s16, 1
    %p118 = por %p116, %p117
    %p119 = scmp.ne.s32.totalorder %s110, %s111
    %p120 = scmp.eq.s32.totalorder %s16, 0
    %p121 = por %p119, %p120
    %p122 = scmp.ne.s32.totalorder %s110, %s111
    %p123 = scmp.eq.s32.totalorder %s17, 1
    %p124 = por %p122, %p123
    %p126 = scmp.ne.s32.totalorder %s111, %s125
    %p127 = scmp.eq.s32.totalorder %s17, 0
    %p128 = por %p126, %p127
    %p129 = scmp.le.s32.totalorder 1, %s11
    %p130 = scmp.lt.s32.totalorder %s11, 3
    %p131 = pnand %p129, %p130
    %p132 = pneg %p131
    // Predicated region
    $region9: #{tpu_custom_call.1} parent=5 // pred_check
      _
    $region10: #{tpu_custom_call.1} parent=5 // pred_check_branch
      %134 = sbr.rel (%p131) target = $region12
    $region11: #{tpu_custom_call.1} parent=5 // pred_region
      %s135 = ssub.s32 %s11, 1
      // Predicated region
      $region13: #{tpu_custom_call.1} parent=11 // pred_check
        %p136 = pneg %p58
      $region14: #{tpu_custom_call.1} parent=11 // pred_check_branch
        %138 = sbr.rel (%p136) target = $region16
      $region15: #{tpu_custom_call.1} parent=11 // pred_region
        _
      $region16: #{tpu_custom_call.1} parent=11 // pred_fallthru
        _
      // Predicated region
      $region17: #{tpu_custom_call.1} parent=11 // pred_check
        %p139 = pneg %p79
      $region18: #{tpu_custom_call.1} parent=11 // pred_check_branch
        %141 = sbr.rel (%p139) target = $region20
      $region19: #{tpu_custom_call.1} parent=11 // pred_region
        _
      $region20: #{tpu_custom_call.1} parent=11 // pred_fallthru
        _
    $region12: #{tpu_custom_call.1} parent=5 // pred_fallthru
      _
    %p142 = scmp.lt.s32.totalorder %s11, 2
    // Predicated region
    $region21: #{tpu_custom_call.1} parent=5 // pred_check
      %p143 = pneg %p142
    $region22: #{tpu_custom_call.1} parent=5 // pred_check_branch
      %145 = sbr.rel (%p143) target = $region24
    $region23: #{tpu_custom_call.1} parent=5 // pred_region
      // Predicated region
      $region25: #{tpu_custom_call.1} parent=23 // pred_check
        %p146 = pneg %p31
      $region26: #{tpu_custom_call.1} parent=23 // pred_check_branch
        %148 = sbr.rel (%p146) target = $region28
      $region27: #{tpu_custom_call.1} parent=23 // pred_region
        %p149 = scmp.lt.s32.totalorder %s11, 1
        %s150 = scalar_select %p149, %s11, 1
        %s151 = smul.addr %s150, 4
        %s152 = smul.addr %s151, 8
        %s153 = scalar_lea.vmem %s0, %s152
      $region28: #{tpu_custom_call.1} parent=23 // pred_fallthru
        _
    $region24: #{tpu_custom_call.1} parent=5 // pred_fallthru
      _
    %p154 = scmp.le.s32.totalorder 1, %s11
    %p155 = scmp.lt.s32.totalorder %s11, 3
    %p156 = pnand %p154, %p155
    %p157 = pneg %p156
    // Predicated region
    $region29: #{tpu_custom_call.1} parent=5 // pred_check
      _
    $region30: #{tpu_custom_call.1} parent=5 // pred_check_branch
      %159 = sbr.rel (%p156) target = $region32
    $region31: #{tpu_custom_call.1} parent=5 // pred_region
      %s160 = ssub.s32 %s11, 1
      %p161 = scmp.lt.s32.totalorder %s16, 1
      %s162 = scalar_select %p161, %s16, 1
      %s163 = smul.addr %s162, 4
      %s164 = smul.addr %s163, 8
      %s165 = scalar_lea.vmem %s0, %s164
      %p166 = pneg %p37
      %p167 = pneg %p34
      %p168 = pneg %p58
      %p169 = pneg %p55
      %p170 = pneg %p79
      %p171 = pneg %p76
      %p172 = pneg %p100
      %p173 = pneg %p97
      %p174 = pneg %p121
      %p175 = pneg %p118
      %p176 = scmp.lt.s32.totalorder %s16, 1
      %s177 = scalar_select %p176, %s16, 1
      %s178 = smul.addr %s177, 4
      %s179 = smul.addr %s178, 8
      %s180 = scalar_lea.vmem %s0, %s179
      %p181 = scmp.eq.s32.totalorder %s16, 0
      // Predicated region
      $region33: #{tpu_custom_call.1} parent=31 // pred_check
        %p182 = pneg %p181
      $region34: #{tpu_custom_call.1} parent=31 // pred_check_branch
        %184 = sbr.rel (%p182) target = $region36
      $region35: #{tpu_custom_call.1} parent=31 // pred_region
        %vm185 = vcmask 7168
        %186 = vst.msk [vmem:[#allocation2] sm:$0xff] %vm185, 0.0
        %187 = vst.msk [vmem:[#allocation2 + $0x8] sm:$0xff] %vm185, 0.0
        %188 = vst.msk [vmem:[#allocation2 + $0x10] sm:$0xff] %vm185, 0.0
        %189 = vst.msk [vmem:[#allocation2 + $0x18] sm:$0xff] %vm185, 0.0
        %190 = vst.msk [vmem:[#allocation3] sm:$0xff] %vm185, 0.0
        %191 = vst.msk [vmem:[#allocation3 + $0x8] sm:$0xff] %vm185, 0.0
        %192 = vst.msk [vmem:[#allocation3 + $0x10] sm:$0xff] %vm185, 0.0
        %193 = vst.msk [vmem:[#allocation3 + $0x18] sm:$0xff] %vm185, 0.0
      $region36: #{tpu_custom_call.1} parent=31 // pred_fallthru
        _
      %v194 = vld [vmem:[%s180] sm:$0xff]
      %v195 = vld [vmem:[%s180 + $0x8] sm:$0xff]
      %v196 = vld [vmem:[%s180 + $0x10] sm:$0xff]
      %v197 = vld [vmem:[%s180 + $0x18] sm:$0xff]
      %v198 = vld [vmem:[#allocation2] sm:$0xff]
      %v199 = vld [vmem:[#allocation2 + $0x8] sm:$0xff]
      %v200 = vld [vmem:[#allocation2 + $0x10] sm:$0xff]
      %v201 = vld [vmem:[#allocation2 + $0x18] sm:$0xff]
      %vm202 = vcmask 64512
      %v203 = vsel %vm202, %v194, 0.0
      %204 = vadd.xlane.f32.xlu0 %v203
      %v205 = vpop.xlane.xlu0 %204
      %v206 = vsel %vm202, %v195, 0.0
      %207 = vadd.xlane.f32.xlu0 %v206
      %v208 = vpop.xlane.xlu0 %207
      %v209 = vsel %vm202, %v196, 0.0
      %210 = vadd.xlane.f32.xlu0 %v209
      %v211 = vpop.xlane.xlu0 %210
      %v212 = vsel %vm202, %v197, 0.0
      %213 = vadd.xlane.f32.xlu0 %v212
      %v214 = vpop.xlane.xlu0 %213
      %v215 = vadd.f32 %v198, %v205
      %v216 = vadd.f32 %v199, %v208
      %v217 = vadd.f32 %v200, %v211
      %v218 = vadd.f32 %v201, %v214
      %vm219 = vcmask 7168
      %220 = vst.msk [vmem:[#allocation2] sm:$0xff] %vm219, %v215
      %221 = vst.msk [vmem:[#allocation2 + $0x8] sm:$0xff] %vm219, %v216
      %222 = vst.msk [vmem:[#allocation2 + $0x10] sm:$0xff] %vm219, %v217
      %223 = vst.msk [vmem:[#allocation2 + $0x18] sm:$0xff] %vm219, %v218
      %v224 = vld [vmem:[#allocation3] sm:$0xff]
      %v225 = vld [vmem:[#allocation3 + $0x8] sm:$0xff]
      %v226 = vld [vmem:[#allocation3 + $0x10] sm:$0xff]
      %v227 = vld [vmem:[#allocation3 + $0x18] sm:$0xff]
      %v228 = vmul.f32 %v194, %v194
      %v229 = vmul.f32 %v195, %v195
      %v230 = vmul.f32 %v196, %v196
      %v231 = vmul.f32 %v197, %v197
      %v232 = vsel %vm202, %v228, 0.0
      %233 = vadd.xlane.f32.xlu0 %v232
      %v234 = vpop.xlane.xlu0 %233
      %v235 = vsel %vm202, %v229, 0.0
      %236 = vadd.xlane.f32.xlu0 %v235
      %v237 = vpop.xlane.xlu0 %236
      %v238 = vsel %vm202, %v230, 0.0
      %239 = vadd.xlane.f32.xlu0 %v238
      %v240 = vpop.xlane.xlu0 %239
      %v241 = vsel %vm202, %v231, 0.0
      %242 = vadd.xlane.f32.xlu0 %v241
      %v243 = vpop.xlane.xlu0 %242
      %v244 = vadd.f32 %v224, %v234
      %v245 = vadd.f32 %v225, %v237
      %v246 = vadd.f32 %v226, %v240
      %v247 = vadd.f32 %v227, %v243
      %248 = vst.msk [vmem:[#allocation3] sm:$0xff] %vm219, %v244
      %249 = vst.msk [vmem:[#allocation3 + $0x8] sm:$0xff] %vm219, %v245
      %250 = vst.msk [vmem:[#allocation3 + $0x10] sm:$0xff] %vm219, %v246
      %251 = vst.msk [vmem:[#allocation3 + $0x18] sm:$0xff] %vm219, %v247
      %p252 = scmp.eq.s32.totalorder %s16, 1
      // Predicated region
      $region37: #{tpu_custom_call.1} parent=31 // pred_check
        %p253 = pneg %p252
      $region38: #{tpu_custom_call.1} parent=31 // pred_check_branch
        %255 = sbr.rel (%p253) target = $region40
      $region39: #{tpu_custom_call.1} parent=31 // pred_region
        %v256 = vld [vmem:[#allocation2] sm:$0xff]
        %v257 = vld [vmem:[#allocation2 + $0x8] sm:$0xff]
        %v258 = vld [vmem:[#allocation2 + $0x10] sm:$0xff]
        %v259 = vld [vmem:[#allocation2 + $0x18] sm:$0xff]
        %v260 = vmul.f32 %v256, 0.0625
        %v261 = vmul.f32 %v257, 0.0625
        %v262 = vmul.f32 %v258, 0.0625
        %v263 = vmul.f32 %v259, 0.0625
        %v264 = vld [vmem:[#allocation3] sm:$0xff]
        %v265 = vld [vmem:[#allocation3 + $0x8] sm:$0xff]
        %v266 = vld [vmem:[#allocation3 + $0x10] sm:$0xff]
        %v267 = vld [vmem:[#allocation3 + $0x18] sm:$0xff]
        %v268 = vmul.f32 %v264, 0.0625
        %v269 = vmul.f32 %v265, 0.0625
        %v270 = vmul.f32 %v266, 0.0625
        %v271 = vmul.f32 %v267, 0.0625
        %v272 = vmul.f32 %v260, %v260
        %v273 = vmul.f32 %v261, %v261
        %v274 = vmul.f32 %v262, %v262
        %v275 = vmul.f32 %v263, %v263
        %v276 = vsub.f32 %v268, %v272
        %v277 = vsub.f32 %v269, %v273
        %v278 = vsub.f32 %v270, %v274
        %v279 = vsub.f32 %v271, %v275
        %v280 = vmax.f32 %v276, 0.0
        %v281 = vmax.f32 %v277, 0.0
        %v282 = vmax.f32 %v278, 0.0
        %v283 = vmax.f32 %v279, 0.0
        %v284 = vadd.f32 %v280, 1e-05
        %v285 = vadd.f32 %v281, 1e-05
        %v286 = vadd.f32 %v282, 1e-05
        %v287 = vadd.f32 %v283, 1e-05
        %v288 = vrsqrt.pop %v284
        %v289 = vrsqrt.pop %v285
        %v290 = vrsqrt.pop %v286
        %v291 = vrsqrt.pop %v287
        %v292 = vld [vmem:[%s1] sm:$0xff]
        %v293 = vld [vmem:[%s1 + $0x8] sm:$0xff]
        %v294 = vld [vmem:[%s1 + $0x10] sm:$0xff]
        %v295 = vld [vmem:[%s1 + $0x18] sm:$0xff]
        %v296 = vmul.f32 %v292, %v288
        %v297 = vmul.f32 %v293, %v289
        %v298 = vmul.f32 %v294, %v290
        %v299 = vmul.f32 %v295, %v291
        %300 = vst.msk [vmem:[%s3] sm:$0xff] %vm219, %v296
        %301 = vst.msk [vmem:[%s3 + $0x8] sm:$0xff] %vm219, %v297
        %302 = vst.msk [vmem:[%s3 + $0x10] sm:$0xff] %vm219, %v298
        %303 = vst.msk [vmem:[%s3 + $0x18] sm:$0xff] %vm219, %v299
        %v304 = vld [vmem:[%s2] sm:$0xff]
        %v305 = vld [vmem:[%s2 + $0x8] sm:$0xff]
        %v306 = vld [vmem:[%s2 + $0x10] sm:$0xff]
        %v307 = vld [vmem:[%s2 + $0x18] sm:$0xff]
        %v308 = vmul.f32 %v260, %v296
        %v309 = vmul.f32 %v261, %v297
        %v310 = vmul.f32 %v262, %v298
        %v311 = vmul.f32 %v263, %v299
        %v312 = vsub.f32 %v304, %v308
        %v313 = vsub.f32 %v305, %v309
        %v314 = vsub.f32 %v306, %v310
        %v315 = vsub.f32 %v307, %v311
        %316 = vst.msk [vmem:[%s4] sm:$0xff] %vm219, %v312
        %317 = vst.msk [vmem:[%s4 + $0x8] sm:$0xff] %vm219, %v313
        %318 = vst.msk [vmem:[%s4 + $0x10] sm:$0xff] %vm219, %v314
        %319 = vst.msk [vmem:[%s4 + $0x18] sm:$0xff] %vm219, %v315
      $region40: #{tpu_custom_call.1} parent=31 // pred_fallthru
        _
      // Predicated region
      $region41: #{tpu_custom_call.1} parent=31 // pred_check
        %p320 = pneg %p97
      $region42: #{tpu_custom_call.1} parent=31 // pred_check_branch
        %322 = sbr.rel (%p320) target = $region44
      $region43: #{tpu_custom_call.1} parent=31 // pred_region
        _
      $region44: #{tpu_custom_call.1} parent=31 // pred_fallthru
        _
      // Predicated region
      $region45: #{tpu_custom_call.1} parent=31 // pred_check
        %p323 = pneg %p118
      $region46: #{tpu_custom_call.1} parent=31 // pred_check_branch
        %325 = sbr.rel (%p323) target = $region48
      $region47: #{tpu_custom_call.1} parent=31 // pred_region
        _
      $region48: #{tpu_custom_call.1} parent=31 // pred_fallthru
        _
      // Predicated region
      $region49: #{tpu_custom_call.1} parent=31 // pred_check
        %p326 = pneg %p97
      $region50: #{tpu_custom_call.1} parent=31 // pred_check_branch
        %328 = sbr.rel (%p326) target = $region52
      $region51: #{tpu_custom_call.1} parent=31 // pred_region
        _
      $region52: #{tpu_custom_call.1} parent=31 // pred_fallthru
        _
      // Predicated region
      $region53: #{tpu_custom_call.1} parent=31 // pred_check
        %p329 = pneg %p118
      $region54: #{tpu_custom_call.1} parent=31 // pred_check_branch
        %331 = sbr.rel (%p329) target = $region56
      $region55: #{tpu_custom_call.1} parent=31 // pred_region
        _
      $region56: #{tpu_custom_call.1} parent=31 // pred_fallthru
        _
    $region32: #{tpu_custom_call.1} parent=5 // pred_fallthru
      _
    %p332 = scmp.le.s32.totalorder 2, %s11
    // Predicated region
    $region57: #{tpu_custom_call.1} parent=5 // pred_check
      %p333 = pneg %p332
    $region58: #{tpu_custom_call.1} parent=5 // pred_check_branch
      %335 = sbr.rel (%p333) target = $region60
    $region59: #{tpu_custom_call.1} parent=5 // pred_region
      %s336 = ssub.s32 %s11, 2
    $region60: #{tpu_custom_call.1} parent=5 // pred_fallthru
      _
  $region6: #{tpu_custom_call.1} parent=0 // loop_footer
    %s15 = sadd.s32 1, %s11
  $region7: #{tpu_custom_call.1} parent=0 // loop_footer_branch
    %10 = sbr.rel target = $region3
  $region8: #{tpu_custom_call.1} parent=0 // loop_exit
    _

</llo_original>
